<compile_context>
chip_gen: v7x
topology: tpu7x:2x2x1
jax: 0.10.0
libtpu: 0.0.40
codegen_flags: <defaults>
</compile_context>

<pallas_src>
import jax
import jax.numpy as jnp
from jax import lax
from jax.experimental import pallas as pl
from jax.experimental.pallas import tpu as pltpu

EPS = 1e-5


def _pick_row_chunk(c_blk, cap=256):
    """Largest divisor of c_blk that is a multiple of 8 and <= cap."""
    if c_blk <= cap:
        return c_blk
    for d in range(cap - (cap % 8), 7, -8):
        if c_blk % d == 0:
            return d
    return c_blk  # fallback: whole block (always a legal slice)


def _num_channel_blocks(C):
    """2 channel blocks only when the chip has 2 TensorCores, else 1."""
    try:
        kind = jax.devices()[0].device_kind.lower()
    except Exception:
        kind = ""
    multi_tc = ("v7" in kind) or ("v4" in kind)
    if multi_tc and C % 16 == 0:
        return 2
    return 1


def _make_kernel(inv_n, row_chunk, n_chunks):
    def _bn_add_kernel(x_ref, res_ref, g_ref, b_ref, o_ref):
        # x_ref/res_ref/o_ref: (c_blk, L); g_ref/b_ref: (c_blk, 1).
        def body(i, carry):
            r0 = pl.multiple_of(i * row_chunk, 8)
            sl = pl.ds(r0, row_chunk)

            x = x_ref[sl, :].astype(jnp.float32)                 # (chunk, L)
            mean = jnp.sum(x, axis=1, keepdims=True) * inv_n     # (chunk, 1)
            centered = x - mean
            var = jnp.sum(centered * centered, axis=1, keepdims=True) * inv_n
            inv_std = lax.rsqrt(var + EPS)                       # EUP slot

            scale = g_ref[sl, :].astype(jnp.float32) * inv_std   # gamma/std
            shift = b_ref[sl, :].astype(jnp.float32)             # beta

            # Residual is loaded only for the final fused add (keeps live vregs
            # bounded to roughly two chunk-sized tiles).
            o_ref[sl, :] = (
                res_ref[sl, :].astype(jnp.float32) + centered * scale + shift
            ).astype(o_ref.dtype)
            return carry

        lax.fori_loop(0, n_chunks, body, 0)

    return _bn_add_kernel


@jax.jit
def batchnorm_add(x188, x181, gamma, beta):
    """Returns x181 + BatchNorm2d(x188) with batch statistics (training mode).

    x188, x181: NCHW float32 arrays of identical shape.
    gamma, beta: (C,) float32 affine parameters.
    """
    N, C, H, W = x188.shape
    hw = H * W
    n_red = N * hw  # elements reduced per channel
    itemsize = jnp.dtype(x188.dtype).itemsize

    # Free (C, L) view for N == 1; explicit transpose only when N > 1.
    if N == 1:
        x2d = x188.reshape(C, hw)
        r2d = x181.reshape(C, hw)
    else:
        x2d = jnp.transpose(x188, (1, 0, 2, 3)).reshape(C, n_red)
        r2d = jnp.transpose(x181, (1, 0, 2, 3)).reshape(C, n_red)
    L = x2d.shape[1]

    g2d = gamma.astype(x188.dtype).reshape(C, 1)
    b2d = beta.astype(x188.dtype).reshape(C, 1)

    nblk = _num_channel_blocks(C)
    c_blk = C // nblk
    row_chunk = _pick_row_chunk(c_blk)
    n_chunks = c_blk // row_chunk

    kernel = _make_kernel(1.0 / float(n_red), row_chunk, n_chunks)
    cmap = lambda i: (i, 0)

    # TODO(synk): if C*L grows (larger feature maps / batch), tile the L
    # (reduction) axis with a two-pass accumulator structure and size the VMEM
    # budget against v7x's 64 MiB ceiling; at (912, 49) a single resident block
    # per channel group is trivially within the default scoped limit on every
    # generation, so no custom vmem_limit_bytes is needed.
    # TODO(synk): if plain "parallel" does not shard the 2-block grid across
    # v7x's two TensorCores in a given toolchain, switch that axis to
    # pltpu.CORE_PARALLEL.
    out2d = pl.pallas_call(
        kernel,
        out_shape=jax.ShapeDtypeStruct((C, L), x188.dtype),
        grid=(nblk,),
        in_specs=[
            pl.BlockSpec((c_blk, L), cmap),  # x
            pl.BlockSpec((c_blk, L), cmap),  # residual
            pl.BlockSpec((c_blk, 1), cmap),  # gamma
            pl.BlockSpec((c_blk, 1), cmap),  # beta
        ],
        out_specs=pl.BlockSpec((c_blk, L), cmap),
        compiler_params=pltpu.CompilerParams(
            dimension_semantics=("parallel",),
        ),
        cost_estimate=pl.CostEstimate(
            flops=7 * C * L,
            transcendentals=C,
            bytes_accessed=(3 * C * L + 3 * C) * itemsize,
        ),
    )(x2d, r2d, g2d, b2d)

    # (C, L) -> NCHW (free reshape when N == 1).
    if N == 1:
        return out2d.reshape(N, C, H, W)
    return jnp.transpose(out2d.reshape(C, N, H, W), (1, 0, 2, 3))


if __name__ == "__main__":
    key = jax.random.PRNGKey(0)
    k1, k2, k3, k4 = jax.random.split(key, 4)

    N, C, H, W = 1, 912, 7, 7  # shapes implied by the module
    x188 = jax.random.normal(k1, (N, C, H, W), dtype=jnp.float32)
    x181 = jax.random.normal(k2, (N, C, H, W), dtype=jnp.float32)

    # Non-trivial affine params (PyTorch default init would be gamma=1, beta=0)
    # to actually exercise the affine path.
    gamma = 1.0 + 0.1 * jax.random.normal(k3, (C,), dtype=jnp.float32)
    beta = 0.1 * jax.random.normal(k4, (C,), dtype=jnp.float32)

    out = batchnorm_add(x188, x181, gamma, beta)
    jax.block_until_ready(out)

    # Correctness vs pure-JAX reference (training-mode BN with batch stats + add).
    mean = jnp.mean(x188, axis=(0, 2, 3), keepdims=True)
    var = jnp.mean((x188 - mean) ** 2, axis=(0, 2, 3), keepdims=True)
    ref = (
        x181
        + (x188 - mean) * lax.rsqrt(var + EPS) * gamma.reshape(1, C, 1, 1)
        + beta.reshape(1, C, 1, 1)
    )
    assert out.shape == (N, C, H, W)
    assert jnp.max(jnp.abs(out - ref)) < 2e-4
    print("KERNEL_OK")
</pallas_src>

<mosaic_0001>
module attributes {stable_mosaic.version = 11 : i64} {
  func.func @_bn_add_kernel(%arg0: i32, %arg1: memref<912x49xf32, #tpu.memory_space<vmem>>, %arg2: memref<912x49xf32, #tpu.memory_space<vmem>>, %arg3: memref<912x1xf32, #tpu.memory_space<vmem>>, %arg4: memref<912x1xf32, #tpu.memory_space<vmem>>, %arg5: memref<912x49xf32, #tpu.memory_space<vmem>>) attributes {dimension_semantics = [#tpu.dimension_semantics<parallel>], iteration_bounds = array<i64: 1>, scalar_prefetch = 0 : i64, scratch_operands = 0 : i64, tpu.core_type = #tpu.core_type<tc>, window_params = [{transform_indices = @transform_0, window_bounds = array<i64: 912, 49>}, {transform_indices = @transform_1, window_bounds = array<i64: 912, 49>}, {transform_indices = @transform_2, window_bounds = array<i64: 912, 1>}, {transform_indices = @transform_3, window_bounds = array<i64: 912, 1>}, {transform_indices = @transform_4, window_bounds = array<i64: 912, 49>}]} {
    %c0_i32 = arith.constant 0 : i32
    %c6_i32 = arith.constant 6 : i32
    %0 = arith.addi %c0_i32, %c6_i32 : i32
    %c1_i32 = arith.constant 1 : i32
    scf.for %arg6 = %c0_i32 to %0 step %c1_i32  : i32 {
      %c152_i32 = arith.constant 152 : i32
      %1 = arith.muli %arg6, %c152_i32 : i32
      %2 = tpu.assume_multiple %1, 8 : i32
      %3 = arith.index_cast %2 : i32 to index
      %c0 = arith.constant 0 : index
      %4 = vector.load %arg1[%3, %c0] : memref<912x49xf32, #tpu.memory_space<vmem>>, vector<152x49xf32>
      %cst = arith.constant dense<0.000000e+00> : vector<152xf32>
      %5 = vector.multi_reduction <add>, %4, %cst [1] : vector<152x49xf32> to vector<152xf32>
      %6 = vector.shape_cast %5 : vector<152xf32> to vector<152x1xf32>
      %cst_1 = arith.constant 0.0204081628 : f32
      %7 = vector.broadcast %cst_1 : f32 to vector<152x1xf32>
      %8 = arith.mulf %6, %7 : vector<152x1xf32>
      %9 = vector.broadcast %8 : vector<152x1xf32> to vector<152x49xf32>
      %10 = arith.subf %4, %9 : vector<152x49xf32>
      %11 = arith.mulf %10, %10 : vector<152x49xf32>
      %cst_2 = arith.constant dense<0.000000e+00> : vector<152xf32>
      %12 = vector.multi_reduction <add>, %11, %cst_2 [1] : vector<152x49xf32> to vector<152xf32>
      %13 = vector.shape_cast %12 : vector<152xf32> to vector<152x1xf32>
      %cst_3 = arith.constant 0.0204081628 : f32
      %14 = vector.broadcast %cst_3 : f32 to vector<152x1xf32>
      %15 = arith.mulf %13, %14 : vector<152x1xf32>
      %cst_4 = arith.constant 9.99999974E-6 : f32
      %16 = vector.broadcast %cst_4 : f32 to vector<152x1xf32>
      %17 = arith.addf %15, %16 : vector<152x1xf32>
      %18 = math.rsqrt %17 : vector<152x1xf32>
      %19 = arith.index_cast %2 : i32 to index
      %c0_5 = arith.constant 0 : index
      %20 = vector.load %arg3[%19, %c0_5] : memref<912x1xf32, #tpu.memory_space<vmem>>, vector<152x1xf32>
      %21 = arith.mulf %20, %18 : vector<152x1xf32>
      %22 = arith.index_cast %2 : i32 to index
      %c0_6 = arith.constant 0 : index
      %23 = vector.load %arg4[%22, %c0_6] : memref<912x1xf32, #tpu.memory_space<vmem>>, vector<152x1xf32>
      %24 = arith.index_cast %2 : i32 to index
      %c0_7 = arith.constant 0 : index
      %25 = vector.load %arg2[%24, %c0_7] : memref<912x49xf32, #tpu.memory_space<vmem>>, vector<152x49xf32>
      %26 = vector.broadcast %21 : vector<152x1xf32> to vector<152x49xf32>
      %27 = arith.mulf %10, %26 : vector<152x49xf32>
      %28 = arith.addf %25, %27 : vector<152x49xf32>
      %29 = vector.broadcast %23 : vector<152x1xf32> to vector<152x49xf32>
      %30 = arith.addf %28, %29 : vector<152x49xf32>
      %31 = arith.index_cast %2 : i32 to index
      %c0_8 = arith.constant 0 : index
      %32 = vector.load %arg5[%31, %c0_8] : memref<912x49xf32, #tpu.memory_space<vmem>>, vector<152x49xf32>
      tpu.vector_store %arg5[%31, %c0_8], %30 {strides = array<i32>} : memref<912x49xf32, #tpu.memory_space<vmem>>, vector<152x49xf32>,
    }
    %c6_i32_0 = arith.constant 6 : i32
    return
  }
  func.func @transform_0(%arg0: i32) -> (i32, i32) {
    %c0_i32 = arith.constant 0 : i32
    %c0_i32_0 = arith.constant 0 : i32
    return %arg0, %c0_i32 : i32, i32
  }
  func.func @transform_1(%arg0: i32) -> (i32, i32) {
    %c0_i32 = arith.constant 0 : i32
    %c0_i32_0 = arith.constant 0 : i32
    return %arg0, %c0_i32 : i32, i32
  }
  func.func @transform_2(%arg0: i32) -> (i32, i32) {
    %c0_i32 = arith.constant 0 : i32
    %c0_i32_0 = arith.constant 0 : i32
    return %arg0, %c0_i32 : i32, i32
  }
  func.func @transform_3(%arg0: i32) -> (i32, i32) {
    %c0_i32 = arith.constant 0 : i32
    %c0_i32_0 = arith.constant 0 : i32
    return %arg0, %c0_i32 : i32, i32
  }
  func.func @transform_4(%arg0: i32) -> (i32, i32) {
    %c0_i32 = arith.constant 0 : i32
    %c0_i32_0 = arith.constant 0 : i32
    return %arg0, %c0_i32 : i32, i32
  }
}

</mosaic_0001>

<llo_original>
// kernel: batchnorm_add.1
$region0: #{batchnorm_add.1}
  #allocation0 [shape = 'u32[]', space=smem, size = 0x4, offset = 0x4, fixed_abs, tag = 'smem constant byte address 0x4 - core index']
  #allocation1 [shape = 'u32[144,128]{1,0:T(1,128)}', space=vmem, size = 0x12000, scoped, tag = 'internal scratch']
  %s0 = inlined_call_operand.vmem [shape: f32[912,49], index: 0, kind: input, shape index: {}]
  %s1 = inlined_call_operand.vmem [shape: f32[912,49], index: 1, kind: input, shape index: {}]
  %s2 = inlined_call_operand.vmem [shape: f32[912,1], index: 2, kind: input, shape index: {}]
  %s3 = inlined_call_operand.vmem [shape: f32[912,1], index: 3, kind: input, shape index: {}]
  %s4 = inlined_call_operand.vmem [shape: f32[912,49], index: 4, kind: output, shape index: {}]
  %s5 = sld [smem:[#allocation0]]
  $region33: #{batchnorm_add.1} parent=0
    _
  %s7 = ssub.s32 1, %s5
  %s8 = scalar_select 0, %s7, %s5
  // Predicated region
  $region2: #{batchnorm_add.1} parent=0 // pred_check
    _
  $region3: #{batchnorm_add.1} parent=0 // pred_check_branch
    %10 = sbr.rel (0) target = $region5
  $region4: #{batchnorm_add.1} parent=0 // pred_region
    _
  $region5: #{batchnorm_add.1} parent=0 // pred_fallthru
    _
  // Predicated region
  $region6: #{batchnorm_add.1} parent=0 // pred_check
    _
  $region7: #{batchnorm_add.1} parent=0 // pred_check_branch
    %12 = sbr.rel (0) target = $region9
  $region8: #{batchnorm_add.1} parent=0 // pred_region
    _
  $region9: #{batchnorm_add.1} parent=0 // pred_fallthru
    _
  // Predicated region
  $region10: #{batchnorm_add.1} parent=0 // pred_check
    _
  $region11: #{batchnorm_add.1} parent=0 // pred_check_branch
    %14 = sbr.rel (0) target = $region13
  $region12: #{batchnorm_add.1} parent=0 // pred_region
    _
  $region13: #{batchnorm_add.1} parent=0 // pred_fallthru
    _
  // Predicated region
  $region14: #{batchnorm_add.1} parent=0 // pred_check
    _
  $region15: #{batchnorm_add.1} parent=0 // pred_check_branch
    %16 = sbr.rel (0) target = $region17
  $region16: #{batchnorm_add.1} parent=0 // pred_region
    _
  $region17: #{batchnorm_add.1} parent=0 // pred_fallthru
    _
  loop: start=0, step=1, limit=6
  $region18: #{batchnorm_add.1} parent=0 // loop_pre_header
    _
  $region19: #{batchnorm_add.1} parent=0 // loop_header
    %s18 = sphi 0, %s22
    %p19 = scmp.ge.s32.totalorder %s18, 6
  $region20: #{batchnorm_add.1} parent=0 // loop_header_branch
    %21 = sbr.rel (%p19) target = $region24
  $region21: #{batchnorm_add.1} parent=0 // loop_body
    %s23 = smul.u32 %s18, 152
    %s24 = scalar_lea.vmem %s0, %s23
    %v25 = vld [vmem:[%s24] sm:$0xff]
    %v26 = vld [vmem:[%s24 + $0x8] sm:$0xff]
    %v27 = vld [vmem:[%s24 + $0x10] sm:$0xff]
    %v28 = vld [vmem:[%s24 + $0x18] sm:$0xff]
    %v29 = vld [vmem:[%s24 + $0x20] sm:$0xff]
    %v30 = vld [vmem:[%s24 + $0x28] sm:$0xff]
    %v31 = vld [vmem:[%s24 + $0x30] sm:$0xff]
    %v32 = vld [vmem:[%s24 + $0x38] sm:$0xff]
    %v33 = vld [vmem:[%s24 + $0x40] sm:$0xff]
    %v34 = vld [vmem:[%s24 + $0x48] sm:$0xff]
    %v35 = vld [vmem:[%s24 + $0x50] sm:$0xff]
    %v36 = vld [vmem:[%s24 + $0x58] sm:$0xff]
    %v37 = vld [vmem:[%s24 + $0x60] sm:$0xff]
    %v38 = vld [vmem:[%s24 + $0x68] sm:$0xff]
    %v39 = vld [vmem:[%s24 + $0x70] sm:$0xff]
    %v40 = vld [vmem:[%s24 + $0x78] sm:$0xff]
    %v41 = vld [vmem:[%s24 + $0x80] sm:$0xff]
    %v42 = vld [vmem:[%s24 + $0x88] sm:$0xff]
    %v43 = vld [vmem:[%s24 + $0x90] sm:$0xff]
    %vm44 = vcmask 400384
    %v45 = vsel %vm44, %v25, 0.0
    %46 = vadd.xlane.f32.xlu0 %v45
    %v47 = vpop.xlane.xlu0 %46
    %v48 = vsel %vm44, %v26, 0.0
    %49 = vadd.xlane.f32.xlu0 %v48
    %v50 = vpop.xlane.xlu0 %49
    %v51 = vsel %vm44, %v27, 0.0
    %52 = vadd.xlane.f32.xlu0 %v51
    %v53 = vpop.xlane.xlu0 %52
    %v54 = vsel %vm44, %v28, 0.0
    %55 = vadd.xlane.f32.xlu0 %v54
    %v56 = vpop.xlane.xlu0 %55
    %v57 = vsel %vm44, %v29, 0.0
    %58 = vadd.xlane.f32.xlu0 %v57
    %v59 = vpop.xlane.xlu0 %58
    %v60 = vsel %vm44, %v30, 0.0
    %61 = vadd.xlane.f32.xlu0 %v60
    %v62 = vpop.xlane.xlu0 %61
    %v63 = vsel %vm44, %v31, 0.0
    %64 = vadd.xlane.f32.xlu0 %v63
    %v65 = vpop.xlane.xlu0 %64
    %v66 = vsel %vm44, %v32, 0.0
    %67 = vadd.xlane.f32.xlu0 %v66
    %v68 = vpop.xlane.xlu0 %67
    %v69 = vsel %vm44, %v33, 0.0
    %70 = vadd.xlane.f32.xlu0 %v69
    %v71 = vpop.xlane.xlu0 %70
    %v72 = vsel %vm44, %v34, 0.0
    %73 = vadd.xlane.f32.xlu0 %v72
    %v74 = vpop.xlane.xlu0 %73
    %v75 = vsel %vm44, %v35, 0.0
    %76 = vadd.xlane.f32.xlu0 %v75
    %v77 = vpop.xlane.xlu0 %76
    %v78 = vsel %vm44, %v36, 0.0
    %79 = vadd.xlane.f32.xlu0 %v78
    %v80 = vpop.xlane.xlu0 %79
    %v81 = vsel %vm44, %v37, 0.0
    %82 = vadd.xlane.f32.xlu0 %v81
    %v83 = vpop.xlane.xlu0 %82
    %v84 = vsel %vm44, %v38, 0.0
    %85 = vadd.xlane.f32.xlu0 %v84
    %v86 = vpop.xlane.xlu0 %85
    %v87 = vsel %vm44, %v39, 0.0
    %88 = vadd.xlane.f32.xlu0 %v87
    %v89 = vpop.xlane.xlu0 %88
    %v90 = vsel %vm44, %v40, 0.0
    %91 = vadd.xlane.f32.xlu0 %v90
    %v92 = vpop.xlane.xlu0 %91
    %v93 = vsel %vm44, %v41, 0.0
    %94 = vadd.xlane.f32.xlu0 %v93
    %v95 = vpop.xlane.xlu0 %94
    %v96 = vsel %vm44, %v42, 0.0
    %97 = vadd.xlane.f32.xlu0 %v96
    %v98 = vpop.xlane.xlu0 %97
    %v99 = vsel %vm44, %v43, 0.0
    %100 = vadd.xlane.f32.xlu0 %v99
    %v101 = vpop.xlane.xlu0 %100
    %v102 = vmul.f32 %v47, 0.020408163
    %v103 = vmul.f32 %v50, 0.020408163
    %v104 = vmul.f32 %v53, 0.020408163
    %v105 = vmul.f32 %v56, 0.020408163
    %v106 = vmul.f32 %v59, 0.020408163
    %v107 = vmul.f32 %v62, 0.020408163
    %v108 = vmul.f32 %v65, 0.020408163
    %v109 = vmul.f32 %v68, 0.020408163
    %v110 = vmul.f32 %v71, 0.020408163
    %v111 = vmul.f32 %v74, 0.020408163
    %v112 = vmul.f32 %v77, 0.020408163
    %v113 = vmul.f32 %v80, 0.020408163
    %v114 = vmul.f32 %v83, 0.020408163
    %v115 = vmul.f32 %v86, 0.020408163
    %v116 = vmul.f32 %v89, 0.020408163
    %v117 = vmul.f32 %v92, 0.020408163
    %v118 = vmul.f32 %v95, 0.020408163
    %v119 = vmul.f32 %v98, 0.020408163
    %v120 = vmul.f32 %v101, 0.020408163
    %v121 = vsub.f32 %v25, %v102
    %v122 = vsub.f32 %v26, %v103
    %v123 = vsub.f32 %v27, %v104
    %v124 = vsub.f32 %v28, %v105
    %v125 = vsub.f32 %v29, %v106
    %v126 = vsub.f32 %v30, %v107
    %v127 = vsub.f32 %v31, %v108
    %v128 = vsub.f32 %v32, %v109
    %v129 = vsub.f32 %v33, %v110
    %v130 = vsub.f32 %v34, %v111
    %v131 = vsub.f32 %v35, %v112
    %v132 = vsub.f32 %v36, %v113
    %v133 = vsub.f32 %v37, %v114
    %v134 = vsub.f32 %v38, %v115
    %v135 = vsub.f32 %v39, %v116
    %v136 = vsub.f32 %v40, %v117
    %v137 = vsub.f32 %v41, %v118
    %v138 = vsub.f32 %v42, %v119
    %v139 = vsub.f32 %v43, %v120
    %v140 = vmul.f32 %v121, %v121
    %v141 = vmul.f32 %v122, %v122
    %v142 = vmul.f32 %v123, %v123
    %v143 = vmul.f32 %v124, %v124
    %v144 = vmul.f32 %v125, %v125
    %v145 = vmul.f32 %v126, %v126
    %v146 = vmul.f32 %v127, %v127
    %v147 = vmul.f32 %v128, %v128
    %v148 = vmul.f32 %v129, %v129
    %v149 = vmul.f32 %v130, %v130
    %v150 = vmul.f32 %v131, %v131
    %v151 = vmul.f32 %v132, %v132
    %v152 = vmul.f32 %v133, %v133
    %v153 = vmul.f32 %v134, %v134
    %v154 = vmul.f32 %v135, %v135
    %v155 = vmul.f32 %v136, %v136
    %v156 = vmul.f32 %v137, %v137
    %v157 = vmul.f32 %v138, %v138
    %v158 = vmul.f32 %v139, %v139
    %v159 = vsel %vm44, %v140, 0.0
    %160 = vadd.xlane.f32.xlu0 %v159
    %v161 = vpop.xlane.xlu0 %160
    %v162 = vsel %vm44, %v141, 0.0
    %163 = vadd.xlane.f32.xlu0 %v162
    %v164 = vpop.xlane.xlu0 %163
    %v165 = vsel %vm44, %v142, 0.0
    %166 = vadd.xlane.f32.xlu0 %v165
    %v167 = vpop.xlane.xlu0 %166
    %v168 = vsel %vm44, %v143, 0.0
    %169 = vadd.xlane.f32.xlu0 %v168
    %v170 = vpop.xlane.xlu0 %169
    %v171 = vsel %vm44, %v144, 0.0
    %172 = vadd.xlane.f32.xlu0 %v171
    %v173 = vpop.xlane.xlu0 %172
    %v174 = vsel %vm44, %v145, 0.0
    %175 = vadd.xlane.f32.xlu0 %v174
    %v176 = vpop.xlane.xlu0 %175
    %v177 = vsel %vm44, %v146, 0.0
    %178 = vadd.xlane.f32.xlu0 %v177
    %v179 = vpop.xlane.xlu0 %178
    %v180 = vsel %vm44, %v147, 0.0
    %181 = vadd.xlane.f32.xlu0 %v180
    %v182 = vpop.xlane.xlu0 %181
    %v183 = vsel %vm44, %v148, 0.0
    %184 = vadd.xlane.f32.xlu0 %v183
    %v185 = vpop.xlane.xlu0 %184
    %v186 = vsel %vm44, %v149, 0.0
    %187 = vadd.xlane.f32.xlu0 %v186
    %v188 = vpop.xlane.xlu0 %187
    %v189 = vsel %vm44, %v150, 0.0
    %190 = vadd.xlane.f32.xlu0 %v189
    %v191 = vpop.xlane.xlu0 %190
    %v192 = vsel %vm44, %v151, 0.0
    %193 = vadd.xlane.f32.xlu0 %v192
    %v194 = vpop.xlane.xlu0 %193
    %v195 = vsel %vm44, %v152, 0.0
    %196 = vadd.xlane.f32.xlu0 %v195
    %v197 = vpop.xlane.xlu0 %196
    %v198 = vsel %vm44, %v153, 0.0
    %199 = vadd.xlane.f32.xlu0 %v198
    %v200 = vpop.xlane.xlu0 %199
    %v201 = vsel %vm44, %v154, 0.0
    %202 = vadd.xlane.f32.xlu0 %v201
    %v203 = vpop.xlane.xlu0 %202
    %v204 = vsel %vm44, %v155, 0.0
    %205 = vadd.xlane.f32.xlu0 %v204
    %v206 = vpop.xlane.xlu0 %205
    %v207 = vsel %vm44, %v156, 0.0
    %208 = vadd.xlane.f32.xlu0 %v207
    %v209 = vpop.xlane.xlu0 %208
    %v210 = vsel %vm44, %v157, 0.0
    %211 = vadd.xlane.f32.xlu0 %v210
    %v212 = vpop.xlane.xlu0 %211
    %v213 = vsel %vm44, %v158, 0.0
    %214 = vadd.xlane.f32.xlu0 %v213
    %v215 = vpop.xlane.xlu0 %214
    %v216 = vmul.f32 %v161, 0.020408163
    %v217 = vmul.f32 %v164, 0.020408163
    %v218 = vmul.f32 %v167, 0.020408163
    %v219 = vmul.f32 %v170, 0.020408163
    %v220 = vmul.f32 %v173, 0.020408163
    %v221 = vmul.f32 %v176, 0.020408163
    %v222 = vmul.f32 %v179, 0.020408163
    %v223 = vmul.f32 %v182, 0.020408163
    %v224 = vmul.f32 %v185, 0.020408163
    %v225 = vmul.f32 %v188, 0.020408163
    %v226 = vmul.f32 %v191, 0.020408163
    %v227 = vmul.f32 %v194, 0.020408163
    %v228 = vmul.f32 %v197, 0.020408163
    %v229 = vmul.f32 %v200, 0.020408163
    %v230 = vmul.f32 %v203, 0.020408163
    %v231 = vmul.f32 %v206, 0.020408163
    %v232 = vmul.f32 %v209, 0.020408163
    %v233 = vmul.f32 %v212, 0.020408163
    %v234 = vmul.f32 %v215, 0.020408163
    %v235 = vadd.f32 %v216, 1e-05
    %v236 = vadd.f32 %v217, 1e-05
    %v237 = vadd.f32 %v218, 1e-05
    %v238 = vadd.f32 %v219, 1e-05
    %v239 = vadd.f32 %v220, 1e-05
    %v240 = vadd.f32 %v221, 1e-05
    %v241 = vadd.f32 %v222, 1e-05
    %v242 = vadd.f32 %v223, 1e-05
    %v243 = vadd.f32 %v224, 1e-05
    %v244 = vadd.f32 %v225, 1e-05
    %v245 = vadd.f32 %v226, 1e-05
    %v246 = vadd.f32 %v227, 1e-05
    %v247 = vadd.f32 %v228, 1e-05
    %v248 = vadd.f32 %v229, 1e-05
    %v249 = vadd.f32 %v230, 1e-05
    %v250 = vadd.f32 %v231, 1e-05
    %v251 = vadd.f32 %v232, 1e-05
    %v252 = vadd.f32 %v233, 1e-05
    %v253 = vadd.f32 %v234, 1e-05
    %v254 = vrsqrt.pop %v235
    %v255 = vrsqrt.pop %v236
    %v256 = vrsqrt.pop %v237
    %v257 = vrsqrt.pop %v238
    %v258 = vrsqrt.pop %v239
    %v259 = vrsqrt.pop %v240
    %v260 = vrsqrt.pop %v241
    %v261 = vrsqrt.pop %v242
    %v262 = vrsqrt.pop %v243
    %v263 = vrsqrt.pop %v244
    %v264 = vrsqrt.pop %v245
    %v265 = vrsqrt.pop %v246
    %v266 = vrsqrt.pop %v247
    %v267 = vrsqrt.pop %v248
    %v268 = vrsqrt.pop %v249
    %v269 = vrsqrt.pop %v250
    %v270 = vrsqrt.pop %v251
    %v271 = vrsqrt.pop %v252
    %v272 = vrsqrt.pop %v253
    %s273 = scalar_lea.vmem %s2, %s23
    %v274 = vld [vmem:[%s273] sm:$0xff]
    %v275 = vld [vmem:[%s273 + $0x8] sm:$0xff]
    %v276 = vld [vmem:[%s273 + $0x10] sm:$0xff]
    %v277 = vld [vmem:[%s273 + $0x18] sm:$0xff]
    %v278 = vld [vmem:[%s273 + $0x20] sm:$0xff]
    %v279 = vld [vmem:[%s273 + $0x28] sm:$0xff]
    %v280 = vld [vmem:[%s273 + $0x30] sm:$0xff]
    %v281 = vld [vmem:[%s273 + $0x38] sm:$0xff]
    %v282 = vld [vmem:[%s273 + $0x40] sm:$0xff]
    %v283 = vld [vmem:[%s273 + $0x48] sm:$0xff]
    %v284 = vld [vmem:[%s273 + $0x50] sm:$0xff]
    %v285 = vld [vmem:[%s273 + $0x58] sm:$0xff]
    %v286 = vld [vmem:[%s273 + $0x60] sm:$0xff]
    %v287 = vld [vmem:[%s273 + $0x68] sm:$0xff]
    %v288 = vld [vmem:[%s273 + $0x70] sm:$0xff]
    %v289 = vld [vmem:[%s273 + $0x78] sm:$0xff]
    %v290 = vld [vmem:[%s273 + $0x80] sm:$0xff]
    %v291 = vld [vmem:[%s273 + $0x88] sm:$0xff]
    %v292 = vld [vmem:[%s273 + $0x90] sm:$0xff]
    %v293 = vmul.f32 %v274, %v254
    %v294 = vmul.f32 %v275, %v255
    %v295 = vmul.f32 %v276, %v256
    %v296 = vmul.f32 %v277, %v257
    %v297 = vmul.f32 %v278, %v258
    %v298 = vmul.f32 %v279, %v259
    %v299 = vmul.f32 %v280, %v260
    %v300 = vmul.f32 %v281, %v261
    %v301 = vmul.f32 %v282, %v262
    %v302 = vmul.f32 %v283, %v263
    %v303 = vmul.f32 %v284, %v264
    %v304 = vmul.f32 %v285, %v265
    %v305 = vmul.f32 %v286, %v266
    %v306 = vmul.f32 %v287, %v267
    %v307 = vmul.f32 %v288, %v268
    %v308 = vmul.f32 %v289, %v269
    %v309 = vmul.f32 %v290, %v270
    %v310 = vmul.f32 %v291, %v271
    %v311 = vmul.f32 %v292, %v272
    %s312 = scalar_lea.vmem %s3, %s23
    %v313 = vld [vmem:[%s312] sm:$0xff]
    %v314 = vld [vmem:[%s312 + $0x8] sm:$0xff]
    %v315 = vld [vmem:[%s312 + $0x10] sm:$0xff]
    %v316 = vld [vmem:[%s312 + $0x18] sm:$0xff]
    %v317 = vld [vmem:[%s312 + $0x20] sm:$0xff]
    %v318 = vld [vmem:[%s312 + $0x28] sm:$0xff]
    %v319 = vld [vmem:[%s312 + $0x30] sm:$0xff]
    %v320 = vld [vmem:[%s312 + $0x38] sm:$0xff]
    %v321 = vld [vmem:[%s312 + $0x40] sm:$0xff]
    %v322 = vld [vmem:[%s312 + $0x48] sm:$0xff]
    %v323 = vld [vmem:[%s312 + $0x50] sm:$0xff]
    %v324 = vld [vmem:[%s312 + $0x58] sm:$0xff]
    %v325 = vld [vmem:[%s312 + $0x60] sm:$0xff]
    %v326 = vld [vmem:[%s312 + $0x68] sm:$0xff]
    %v327 = vld [vmem:[%s312 + $0x70] sm:$0xff]
    %v328 = vld [vmem:[%s312 + $0x78] sm:$0xff]
    %v329 = vld [vmem:[%s312 + $0x80] sm:$0xff]
    %v330 = vld [vmem:[%s312 + $0x88] sm:$0xff]
    %v331 = vld [vmem:[%s312 + $0x90] sm:$0xff]
    %s332 = scalar_lea.vmem %s1, %s23
    %v333 = vld [vmem:[%s332] sm:$0xff]
    %v334 = vld [vmem:[%s332 + $0x8] sm:$0xff]
    %v335 = vld [vmem:[%s332 + $0x10] sm:$0xff]
    %v336 = vld [vmem:[%s332 + $0x18] sm:$0xff]
    %v337 = vld [vmem:[%s332 + $0x20] sm:$0xff]
    %v338 = vld [vmem:[%s332 + $0x28] sm:$0xff]
    %v339 = vld [vmem:[%s332 + $0x30] sm:$0xff]
    %v340 = vld [vmem:[%s332 + $0x38] sm:$0xff]
    %v341 = vld [vmem:[%s332 + $0x40] sm:$0xff]
    %v342 = vld [vmem:[%s332 + $0x48] sm:$0xff]
    %v343 = vld [vmem:[%s332 + $0x50] sm:$0xff]
    %v344 = vld [vmem:[%s332 + $0x58] sm:$0xff]
    %v345 = vld [vmem:[%s332 + $0x60] sm:$0xff]
    %v346 = vld [vmem:[%s332 + $0x68] sm:$0xff]
    %v347 = vld [vmem:[%s332 + $0x70] sm:$0xff]
    %v348 = vld [vmem:[%s332 + $0x78] sm:$0xff]
    %v349 = vld [vmem:[%s332 + $0x80] sm:$0xff]
    %v350 = vld [vmem:[%s332 + $0x88] sm:$0xff]
    %v351 = vld [vmem:[%s332 + $0x90] sm:$0xff]
    %353 = vset.pattern.permute.xlu0 0
    %354 = vperm.xlu0 %353, %v293
    %v355 = vpop.permute.xlu0 %354
    %358 = vset.pattern.permute.xlu0 0
    %359 = vperm.xlu0 %358, %v294
    %v360 = vpop.permute.xlu0 %359
    %363 = vset.pattern.permute.xlu0 0
    %364 = vperm.xlu0 %363, %v295
    %v365 = vpop.permute.xlu0 %364
    %368 = vset.pattern.permute.xlu0 0
    %369 = vperm.xlu0 %368, %v296
    %v370 = vpop.permute.xlu0 %369
    %373 = vset.pattern.permute.xlu0 0
    %374 = vperm.xlu0 %373, %v297
    %v375 = vpop.permute.xlu0 %374
    %378 = vset.pattern.permute.xlu0 0
    %379 = vperm.xlu0 %378, %v298
    %v380 = vpop.permute.xlu0 %379
    %383 = vset.pattern.permute.xlu0 0
    %384 = vperm.xlu0 %383, %v299
    %v385 = vpop.permute.xlu0 %384
    %388 = vset.pattern.permute.xlu0 0
    %389 = vperm.xlu0 %388, %v300
    %v390 = vpop.permute.xlu0 %389
    %393 = vset.pattern.permute.xlu0 0
    %394 = vperm.xlu0 %393, %v301
    %v395 = vpop.permute.xlu0 %394
    %398 = vset.pattern.permute.xlu0 0
    %399 = vperm.xlu0 %398, %v302
    %v400 = vpop.permute.xlu0 %399
    %403 = vset.pattern.permute.xlu0 0
    %404 = vperm.xlu0 %403, %v303
    %v405 = vpop.permute.xlu0 %404
    %408 = vset.pattern.permute.xlu0 0
    %409 = vperm.xlu0 %408, %v304
    %v410 = vpop.permute.xlu0 %409
    %413 = vset.pattern.permute.xlu0 0
    %414 = vperm.xlu0 %413, %v305
    %v415 = vpop.permute.xlu0 %414
    %418 = vset.pattern.permute.xlu0 0
    %419 = vperm.xlu0 %418, %v306
    %v420 = vpop.permute.xlu0 %419
    %423 = vset.pattern.permute.xlu0 0
    %424 = vperm.xlu0 %423, %v307
    %v425 = vpop.permute.xlu0 %424
    %428 = vset.pattern.permute.xlu0 0
    %429 = vperm.xlu0 %428, %v308
    %v430 = vpop.permute.xlu0 %429
    %433 = vset.pattern.permute.xlu0 0
    %434 = vperm.xlu0 %433, %v309
    %v435 = vpop.permute.xlu0 %434
    %438 = vset.pattern.permute.xlu0 0
    %439 = vperm.xlu0 %438, %v310
    %v440 = vpop.permute.xlu0 %439
    %443 = vset.pattern.permute.xlu0 0
    %444 = vperm.xlu0 %443, %v311
    %v445 = vpop.permute.xlu0 %444
    %v447 = vmul.f32 %v121, %v355
    %v448 = vmul.f32 %v122, %v360
    %v449 = vmul.f32 %v123, %v365
    %v450 = vmul.f32 %v124, %v370
    %v451 = vmul.f32 %v125, %v375
    %v452 = vmul.f32 %v126, %v380
    %v453 = vmul.f32 %v127, %v385
    %v454 = vmul.f32 %v128, %v390
    %v455 = vmul.f32 %v129, %v395
    %v456 = vmul.f32 %v130, %v400
    %v457 = vmul.f32 %v131, %v405
    %v458 = vmul.f32 %v132, %v410
    %v459 = vmul.f32 %v133, %v415
    %v460 = vmul.f32 %v134, %v420
    %v461 = vmul.f32 %v135, %v425
    %v462 = vmul.f32 %v136, %v430
    %v463 = vmul.f32 %v137, %v435
    %v464 = vmul.f32 %v138, %v440
    %v465 = vmul.f32 %v139, %v445
    %v466 = vadd.f32 %v333, %v447
    %v467 = vadd.f32 %v334, %v448
    %v468 = vadd.f32 %v335, %v449
    %v469 = vadd.f32 %v336, %v450
    %v470 = vadd.f32 %v337, %v451
    %v471 = vadd.f32 %v338, %v452
    %v472 = vadd.f32 %v339, %v453
    %v473 = vadd.f32 %v340, %v454
    %v474 = vadd.f32 %v341, %v455
    %v475 = vadd.f32 %v342, %v456
    %v476 = vadd.f32 %v343, %v457
    %v477 = vadd.f32 %v344, %v458
    %v478 = vadd.f32 %v345, %v459
    %v479 = vadd.f32 %v346, %v460
    %v480 = vadd.f32 %v347, %v461
    %v481 = vadd.f32 %v348, %v462
    %v482 = vadd.f32 %v349, %v463
    %v483 = vadd.f32 %v350, %v464
    %v484 = vadd.f32 %v351, %v465
    %486 = vset.pattern.permute.xlu0 0
    %487 = vperm.xlu0 %486, %v313
    %v488 = vpop.permute.xlu0 %487
    %491 = vset.pattern.permute.xlu0 0
    %492 = vperm.xlu0 %491, %v314
    %v493 = vpop.permute.xlu0 %492
    %496 = vset.pattern.permute.xlu0 0
    %497 = vperm.xlu0 %496, %v315
    %v498 = vpop.permute.xlu0 %497
    %501 = vset.pattern.permute.xlu0 0
    %502 = vperm.xlu0 %501, %v316
    %v503 = vpop.permute.xlu0 %502
    %506 = vset.pattern.permute.xlu0 0
    %507 = vperm.xlu0 %506, %v317
    %v508 = vpop.permute.xlu0 %507
    %511 = vset.pattern.permute.xlu0 0
    %512 = vperm.xlu0 %511, %v318
    %v513 = vpop.permute.xlu0 %512
    %516 = vset.pattern.permute.xlu0 0
    %517 = vperm.xlu0 %516, %v319
    %v518 = vpop.permute.xlu0 %517
    %521 = vset.pattern.permute.xlu0 0
    %522 = vperm.xlu0 %521, %v320
    %v523 = vpop.permute.xlu0 %522
    %526 = vset.pattern.permute.xlu0 0
    %527 = vperm.xlu0 %526, %v321
    %v528 = vpop.permute.xlu0 %527
    %531 = vset.pattern.permute.xlu0 0
    %532 = vperm.xlu0 %531, %v322
    %v533 = vpop.permute.xlu0 %532
    %536 = vset.pattern.permute.xlu0 0
    %537 = vperm.xlu0 %536, %v323
    %v538 = vpop.permute.xlu0 %537
    %541 = vset.pattern.permute.xlu0 0
    %542 = vperm.xlu0 %541, %v324
    %v543 = vpop.permute.xlu0 %542
    %546 = vset.pattern.permute.xlu0 0
    %547 = vperm.xlu0 %546, %v325
    %v548 = vpop.permute.xlu0 %547
    %551 = vset.pattern.permute.xlu0 0
    %552 = vperm.xlu0 %551, %v326
    %v553 = vpop.permute.xlu0 %552
    %556 = vset.pattern.permute.xlu0 0
    %557 = vperm.xlu0 %556, %v327
    %v558 = vpop.permute.xlu0 %557
    %561 = vset.pattern.permute.xlu0 0
    %562 = vperm.xlu0 %561, %v328
    %v563 = vpop.permute.xlu0 %562
    %566 = vset.pattern.permute.xlu0 0
    %567 = vperm.xlu0 %566, %v329
    %v568 = vpop.permute.xlu0 %567
    %571 = vset.pattern.permute.xlu0 0
    %572 = vperm.xlu0 %571, %v330
    %v573 = vpop.permute.xlu0 %572
    %576 = vset.pattern.permute.xlu0 0
    %577 = vperm.xlu0 %576, %v331
    %v578 = vpop.permute.xlu0 %577
    %v580 = vadd.f32 %v466, %v488
    %v581 = vadd.f32 %v467, %v493
    %v582 = vadd.f32 %v468, %v498
    %v583 = vadd.f32 %v469, %v503
    %v584 = vadd.f32 %v470, %v508
    %v585 = vadd.f32 %v471, %v513
    %v586 = vadd.f32 %v472, %v518
    %v587 = vadd.f32 %v473, %v523
    %v588 = vadd.f32 %v474, %v528
    %v589 = vadd.f32 %v475, %v533
    %v590 = vadd.f32 %v476, %v538
    %v591 = vadd.f32 %v477, %v543
    %v592 = vadd.f32 %v478, %v548
    %v593 = vadd.f32 %v479, %v553
    %v594 = vadd.f32 %v480, %v558
    %v595 = vadd.f32 %v481, %v563
    %v596 = vadd.f32 %v482, %v568
    %v597 = vadd.f32 %v483, %v573
    %v598 = vadd.f32 %v484, %v578
    %s599 = scalar_lea.vmem %s4, %s23
    %600 = vst.msk [vmem:[%s599] sm:$0xff] %vm44, %v580
    %601 = vst.msk [vmem:[%s599 + $0x8] sm:$0xff] %vm44, %v581
    %602 = vst.msk [vmem:[%s599 + $0x10] sm:$0xff] %vm44, %v582
    %603 = vst.msk [vmem:[%s599 + $0x18] sm:$0xff] %vm44, %v583
    %604 = vst.msk [vmem:[%s599 + $0x20] sm:$0xff] %vm44, %v584
    %605 = vst.msk [vmem:[%s599 + $0x28] sm:$0xff] %vm44, %v585
    %606 = vst.msk [vmem:[%s599 + $0x30] sm:$0xff] %vm44, %v586
    %607 = vst.msk [vmem:[%s599 + $0x38] sm:$0xff] %vm44, %v587
    %608 = vst.msk [vmem:[%s599 + $0x40] sm:$0xff] %vm44, %v588
    %609 = vst.msk [vmem:[%s599 + $0x48] sm:$0xff] %vm44, %v589
    %610 = vst.msk [vmem:[%s599 + $0x50] sm:$0xff] %vm44, %v590
    %611 = vst.msk [vmem:[%s599 + $0x58] sm:$0xff] %vm44, %v591
    %612 = vst.msk [vmem:[%s599 + $0x60] sm:$0xff] %vm44, %v592
    %613 = vst.msk [vmem:[%s599 + $0x68] sm:$0xff] %vm44, %v593
    %614 = vst.msk [vmem:[%s599 + $0x70] sm:$0xff] %vm44, %v594
    %615 = vst.msk [vmem:[%s599 + $0x78] sm:$0xff] %vm44, %v595
    %616 = vst.msk [vmem:[%s599 + $0x80] sm:$0xff] %vm44, %v596
    %617 = vst.msk [vmem:[%s599 + $0x88] sm:$0xff] %vm44, %v597
    %618 = vst.msk [vmem:[%s599 + $0x90] sm:$0xff] %vm44, %v598
  $region22: #{batchnorm_add.1} parent=0 // loop_footer
    %s22 = sadd.s32 1, %s18
  $region23: #{batchnorm_add.1} parent=0 // loop_footer_branch
    %17 = sbr.rel target = $region19
  $region24: #{batchnorm_add.1} parent=0 // loop_exit
    _
  // Predicated region
  $region25: #{batchnorm_add.1} parent=0 // pred_check
    _
  $region26: #{batchnorm_add.1} parent=0 // pred_check_branch
    %620 = sbr.rel (0) target = $region28
  $region27: #{batchnorm_add.1} parent=0 // pred_region
    _
  $region28: #{batchnorm_add.1} parent=0 // pred_fallthru
    _
  // Predicated region
  $region29: #{batchnorm_add.1} parent=0 // pred_check
    _
  $region30: #{batchnorm_add.1} parent=0 // pred_check_branch
    %622 = sbr.rel (0) target = $region32
  $region31: #{batchnorm_add.1} parent=0 // pred_region
    _
  $region32: #{batchnorm_add.1} parent=0 // pred_fallthru
    _

</llo_original>
